<compile_context>
chip_gen: v5e
topology: v5e:2x2
jax: 0.10.0
libtpu: 0.0.40
codegen_flags: <defaults>
</compile_context>

<pallas_src>
import jax
import jax.numpy as jnp
from jax.experimental import pallas as pl
from jax.experimental.pallas import tpu as pltpu

EPS = 1e-5


def conv1x1_bn_kernel(x_ref, w_ref, gb_ref, o_ref):
    # x_ref:  (M, Cin)    bf16 input pixels x channels
    # w_ref:  (Cin, Cout) bf16 1x1 conv weight (transposed to output-last)
    # gb_ref: (2, Cout)   f32  packed [gamma; beta]
    # o_ref:  (M, Cout)   f32  lane-dense output (Cout = 128 lanes)
    y = jnp.dot(x_ref[...], w_ref[...],
                preferred_element_type=jnp.float32)          # (M, Cout), f32 acc

    # Training-mode BatchNorm2d: biased batch statistics over (N, H, W) == M,
    # per output channel (columns of y). One pass via sufficient statistics.
    m = y.shape[0]
    inv_m = 1.0 / m
    s1 = jnp.sum(y, axis=0, keepdims=True)                   # (1, Cout)
    s2 = jnp.sum(y * y, axis=0, keepdims=True)               # (1, Cout)
    mean = s1 * inv_m
    var = s2 * inv_m - mean * mean
    inv_std = jax.lax.rsqrt(var + EPS)

    # Fold gamma / inv_std / mean / beta into per-channel scale & shift so the
    # full tile only sees one broadcasted mul + add.
    gamma = gb_ref[0:1, :]                                   # (1, Cout)
    beta = gb_ref[1:2, :]                                    # (1, Cout)
    scale = gamma * inv_std
    shift = beta - mean * scale

    o_ref[...] = (y * scale + shift).astype(o_ref.dtype)


def conv1x1_bn(x_nchw, w_oi, gamma, beta, *, compute_dtype=jnp.bfloat16):
    """x_nchw: (N, Cin, H, W) f32; w_oi: (Cout, Cin); gamma/beta: (Cout,)."""
    n, cin, h, wdim = x_nchw.shape
    cout = w_oi.shape[0]
    m = n * h * wdim

    # NCHW -> (M, Cin): pixel-major rows, contracting dim last (layout plumbing,
    # tiny arrays). Weight -> (Cin, Cout) so the output last dim is Cout.
    x_mc = jnp.transpose(x_nchw, (0, 2, 3, 1)).reshape(m, cin).astype(compute_dtype)
    w_co = jnp.transpose(w_oi, (1, 0)).astype(compute_dtype)
    gb = jnp.stack([gamma, beta]).astype(jnp.float32)        # (2, Cout)

    out_mc = pl.pallas_call(
        conv1x1_bn_kernel,
        out_shape=jax.ShapeDtypeStruct((m, cout), jnp.float32),
        grid=(1,),
        in_specs=[
            pl.BlockSpec((m, cin), lambda i: (0, 0)),
            pl.BlockSpec((cin, cout), lambda i: (0, 0)),
            pl.BlockSpec((2, cout), lambda i: (0, 0)),
        ],
        out_specs=pl.BlockSpec((m, cout), lambda i: (0, 0)),
        compiler_params=pltpu.CompilerParams(
            dimension_semantics=("arbitrary",)
        ),
    )(x_mc, w_co, gb)

    # (M, Cout) -> (N, H, W, Cout) -> NCHW output (25 KB, cheap transpose).
    out = jnp.transpose(out_mc.reshape(n, h, wdim, cout), (0, 3, 1, 2))
    return out.astype(x_nchw.dtype)


def reference(x_nchw, w_oi, gamma, beta):
    # Independent NCHW reference: 1x1 conv + training-mode BatchNorm2d (f32).
    y = jnp.einsum("ncij,oc->noij", x_nchw, w_oi,
                   precision=jax.lax.Precision.HIGHEST)
    mean = jnp.mean(y, axis=(0, 2, 3), keepdims=True)
    var = jnp.mean((y - mean) ** 2, axis=(0, 2, 3), keepdims=True)
    g = gamma.reshape(1, -1, 1, 1)
    b = beta.reshape(1, -1, 1, 1)
    return (y - mean) / jnp.sqrt(var + EPS) * g + b


if __name__ == "__main__":
    key = jax.random.PRNGKey(0)
    k_x, k_w, k_g, k_b = jax.random.split(key, 4)

    # Shapes implied by the module: Conv2d(736 -> 128, 1x1), input 1x736x7x7.
    N, CIN, H, W = 1, 736, 7, 7
    COUT = 128

    x = jax.random.normal(k_x, (N, CIN, H, W), dtype=jnp.float32)
    bound = 1.0 / jnp.sqrt(jnp.float32(CIN))
    w = jax.random.uniform(
        k_w, (COUT, CIN), dtype=jnp.float32, minval=-bound, maxval=bound
    )
    gamma = 1.0 + 0.1 * jax.random.normal(k_g, (COUT,), dtype=jnp.float32)
    beta = 0.1 * jax.random.normal(k_b, (COUT,), dtype=jnp.float32)

    out = conv1x1_bn(x, w, gamma, beta)
    out = jax.block_until_ready(out)

    # Compare against an f32 reference fed the same bf16-quantized inputs so the
    # check validates the kernel itself (matmul + fused BN), not the intended
    # bf16 input-precision reduction.
    x_q = x.astype(jnp.bfloat16).astype(jnp.float32)
    w_q = w.astype(jnp.bfloat16).astype(jnp.float32)
    ref = reference(x_q, w_q, gamma, beta)

    assert out.shape == (N, COUT, H, W), out.shape
    assert jnp.allclose(out, ref, atol=2e-3, rtol=2e-3), (
        float(jnp.max(jnp.abs(out - ref)))
    )

    print("KERNEL_OK")
</pallas_src>

<mosaic_0001>
module attributes {stable_mosaic.version = 11 : i64} {
  func.func @conv1x1_bn_kernel(%arg0: i32, %arg1: memref<49x736xbf16, #tpu.memory_space<vmem>>, %arg2: memref<736x128xbf16, #tpu.memory_space<vmem>>, %arg3: memref<2x128xf32, #tpu.memory_space<vmem>>, %arg4: memref<49x128xf32, #tpu.memory_space<vmem>>) attributes {dimension_semantics = [#tpu.dimension_semantics<arbitrary>], iteration_bounds = array<i64: 1>, scalar_prefetch = 0 : i64, scratch_operands = 0 : i64, tpu.core_type = #tpu.core_type<tc>, window_params = [{pipeline_mode = #tpu.pipeline_mode<synchronous>, transform_indices = @transform_0, window_bounds = array<i64: 49, 736>}, {pipeline_mode = #tpu.pipeline_mode<synchronous>, transform_indices = @transform_1, window_bounds = array<i64: 736, 128>}, {pipeline_mode = #tpu.pipeline_mode<synchronous>, transform_indices = @transform_2, window_bounds = array<i64: 2, 128>}, {pipeline_mode = #tpu.pipeline_mode<synchronous>, transform_indices = @transform_3, window_bounds = array<i64: 49, 128>}]} {
    %c0 = arith.constant 0 : index
    %c0_0 = arith.constant 0 : index
    %0 = vector.load %arg1[%c0, %c0_0] : memref<49x736xbf16, #tpu.memory_space<vmem>>, vector<49x736xbf16>
    %c0_1 = arith.constant 0 : index
    %c0_2 = arith.constant 0 : index
    %1 = vector.load %arg2[%c0_1, %c0_2] : memref<736x128xbf16, #tpu.memory_space<vmem>>, vector<736x128xbf16>
    %cst = arith.constant dense<0.000000e+00> : vector<49x128xf32>
    %2 = tpu.matmul %0, %1, %cst {dimension_numbers = #tpu.dot_dimension_numbers<[1], [0], [0], [1], [0, 0, 1, 1], [], []>} : vector<49x736xbf16>, vector<736x128xbf16>, vector<49x128xf32> -> vector<49x128xf32>
    %cst_3 = arith.constant dense<0.000000e+00> : vector<128xf32>
    %3 = vector.multi_reduction <add>, %2, %cst_3 [0] : vector<49x128xf32> to vector<128xf32>
    %4 = vector.shape_cast %3 : vector<128xf32> to vector<1x128xf32>
    %5 = arith.mulf %2, %2 : vector<49x128xf32>
    %cst_4 = arith.constant dense<0.000000e+00> : vector<128xf32>
    %6 = vector.multi_reduction <add>, %5, %cst_4 [0] : vector<49x128xf32> to vector<128xf32>
    %7 = vector.shape_cast %6 : vector<128xf32> to vector<1x128xf32>
    %cst_5 = arith.constant 0.0204081628 : f32
    %8 = vector.broadcast %cst_5 : f32 to vector<1x128xf32>
    %9 = arith.mulf %4, %8 : vector<1x128xf32>
    %cst_6 = arith.constant 0.0204081628 : f32
    %10 = vector.broadcast %cst_6 : f32 to vector<1x128xf32>
    %11 = arith.mulf %7, %10 : vector<1x128xf32>
    %12 = arith.mulf %9, %9 : vector<1x128xf32>
    %13 = arith.subf %11, %12 : vector<1x128xf32>
    %cst_7 = arith.constant 9.99999974E-6 : f32
    %14 = vector.broadcast %cst_7 : f32 to vector<1x128xf32>
    %15 = arith.addf %13, %14 : vector<1x128xf32>
    %16 = math.rsqrt %15 : vector<1x128xf32>
    %c0_8 = arith.constant 0 : index
    %c0_9 = arith.constant 0 : index
    %17 = vector.load %arg3[%c0_8, %c0_9] : memref<2x128xf32, #tpu.memory_space<vmem>>, vector<1x128xf32>
    %c1 = arith.constant 1 : index
    %c0_10 = arith.constant 0 : index
    %18 = vector.load %arg3[%c1, %c0_10] : memref<2x128xf32, #tpu.memory_space<vmem>>, vector<1x128xf32>
    %19 = arith.mulf %17, %16 : vector<1x128xf32>
    %20 = arith.mulf %9, %19 : vector<1x128xf32>
    %21 = arith.subf %18, %20 : vector<1x128xf32>
    %22 = vector.broadcast %19 : vector<1x128xf32> to vector<49x128xf32>
    %23 = arith.mulf %2, %22 : vector<49x128xf32>
    %24 = vector.broadcast %21 : vector<1x128xf32> to vector<49x128xf32>
    %25 = arith.addf %23, %24 : vector<49x128xf32>
    %c0_11 = arith.constant 0 : index
    %c0_12 = arith.constant 0 : index
    %26 = vector.load %arg4[%c0_11, %c0_12] : memref<49x128xf32, #tpu.memory_space<vmem>>, vector<49x128xf32>
    tpu.vector_store %arg4[%c0_11, %c0_12], %25 {strides = array<i32>} : memref<49x128xf32, #tpu.memory_space<vmem>>, vector<49x128xf32>,
    return
  }
  func.func @transform_0(%arg0: i32) -> (i32, i32) {
    %c0_i32 = arith.constant 0 : i32
    %c0_i32_0 = arith.constant 0 : i32
    %c0_i32_1 = arith.constant 0 : i32
    return %c0_i32, %c0_i32_0 : i32, i32
  }
  func.func @transform_1(%arg0: i32) -> (i32, i32) {
    %c0_i32 = arith.constant 0 : i32
    %c0_i32_0 = arith.constant 0 : i32
    %c0_i32_1 = arith.constant 0 : i32
    return %c0_i32, %c0_i32_0 : i32, i32
  }
  func.func @transform_2(%arg0: i32) -> (i32, i32) {
    %c0_i32 = arith.constant 0 : i32
    %c0_i32_0 = arith.constant 0 : i32
    %c0_i32_1 = arith.constant 0 : i32
    return %c0_i32, %c0_i32_0 : i32, i32
  }
  func.func @transform_3(%arg0: i32) -> (i32, i32) {
    %c0_i32 = arith.constant 0 : i32
    %c0_i32_0 = arith.constant 0 : i32
    %c0_i32_1 = arith.constant 0 : i32
    return %c0_i32, %c0_i32_0 : i32, i32
  }
}

</mosaic_0001>

<llo_original>
// kernel: tpu_custom_call.1
$region0: #{tpu_custom_call.1}
  #allocation0 [shape = 'u32[]', space=smem, size = 0x4, offset = 0x4, fixed_abs, tag = 'smem constant byte address 0x4 - core index']
  #allocation1 [shape = 'u32[72,128]{1,0:T(1,128)}', space=vmem, size = 0x9000, scoped, tag = 'internal scratch']
  %s0 = inlined_call_operand.hbm [shape: bf16[49,736], index: 0, kind: input, shape index: {}]
  %s1 = inlined_call_operand.hbm [shape: bf16[736,128], index: 1, kind: input, shape index: {}]
  %s2 = inlined_call_operand.hbm [shape: f32[2,128], index: 2, kind: input, shape index: {}]
  %s3 = inlined_call_operand.hbm [shape: f32[49,128], index: 3, kind: output, shape index: {}]
  %s4 = sld [smem:[#allocation0]]
  $region34: #{tpu_custom_call.1} parent=0
    _
  %s6 = ssub.s32 1, %s4
  %s7 = scalar_select 0, %s6, %s4
  $region1: #{tpu_custom_call.1} parent=0
    #allocation2 [shape = 'u8[86016]{0}', space=vmem, size = 0x15000, scoped, tag = 'input window, operand 0, single buffered']
    #allocation3 [shape = 's32[1]{0}', space=sflag, size = 0x4, scoped, tag = 'scoped memory for tpu_custom_call.1']
    #allocation4 [shape = 's32[1]{0}', space=sflag, size = 0x4, scoped, tag = 'scoped memory for tpu_custom_call.1']
    #allocation5 [shape = 'u8[188416]{0}', space=vmem, size = 0x2e000, scoped, tag = 'input window, operand 1, single buffered']
    #allocation6 [shape = 's32[1]{0}', space=sflag, size = 0x4, scoped, tag = 'scoped memory for tpu_custom_call.1']
    #allocation7 [shape = 'u8[1024]{0}', space=vmem, size = 0x400, scoped, tag = 'input window, operand 2, single buffered']
    #allocation8 [shape = 'u8[28672]{0}', space=vmem, size = 0x7000, scoped, tag = 'output window, operand 0, single buffered']
    %8 = vsyncpa [#allocation3], 0
    %9 = vsyncpa [#allocation6], 0
    %10 = vsyncpa [#allocation4], 0
    // Predicated region
    $region2: #{tpu_custom_call.1} parent=1 // pred_check
      _
    $region3: #{tpu_custom_call.1} parent=1 // pred_check_branch
      %12 = sbr.rel (0) target = $region5
    $region4: #{tpu_custom_call.1} parent=1 // pred_region
      %14 = vsyncadd [#allocation3], 0
      %s15 = sshll.u32 %s0, 4
      %s16 = int_to_ptr.hbm [resolvable:$true] %s15
      %s17 = sshll.u32 [#allocation2], 4
      %s18 = int_to_ptr.vmem [resolvable:$true] %s17
      %23 = dma.hbm_to_vmem [thread:$0]  %s16, 2688, %s18, [#allocation3], 384, 384, 24
    $region5: #{tpu_custom_call.1} parent=1 // pred_fallthru
      _
    // Predicated region
    $region6: #{tpu_custom_call.1} parent=1 // pred_check
      _
    $region7: #{tpu_custom_call.1} parent=1 // pred_check_branch
      %25 = sbr.rel (0) target = $region9
    $region8: #{tpu_custom_call.1} parent=1 // pred_region
      %27 = vsyncadd [#allocation6], 0
      %s28 = sshll.u32 %s1, 4
      %s29 = int_to_ptr.hbm [resolvable:$true] %s28
      %s30 = sshll.u32 [#allocation5], 4
      %s31 = int_to_ptr.vmem [resolvable:$true] %s30
      %36 = dma.hbm_to_vmem [thread:$0]  %s29, 5888, %s31, [#allocation6], 64, 64, 4
    $region9: #{tpu_custom_call.1} parent=1 // pred_fallthru
      _
    // Predicated region
    $region10: #{tpu_custom_call.1} parent=1 // pred_check
      _
    $region11: #{tpu_custom_call.1} parent=1 // pred_check_branch
      %38 = sbr.rel (0) target = $region13
    $region12: #{tpu_custom_call.1} parent=1 // pred_region
      %40 = vsyncadd [#allocation6], 0
      %s42 = sshll.u32 %s2, 4
      %s43 = int_to_ptr.hbm [resolvable:$true] %s42
      %s44 = sshll.u32 [#allocation7], 4
      %s45 = int_to_ptr.vmem [resolvable:$true] %s44
      %47 = dma.hbm_to_vmem [thread:$0]  %s43, 32, %s45, [#allocation6]
    $region13: #{tpu_custom_call.1} parent=1 // pred_fallthru
      _
    // Predicated region
    $region14: #{tpu_custom_call.1} parent=1 // pred_check
      _
    $region15: #{tpu_custom_call.1} parent=1 // pred_check_branch
      %49 = sbr.rel (0) target = $region17
    $region16: #{tpu_custom_call.1} parent=1 // pred_region
      %51 = dma.done [#allocation3], 2688
    $region17: #{tpu_custom_call.1} parent=1 // pred_fallthru
      _
    // Predicated region
    $region18: #{tpu_custom_call.1} parent=1 // pred_check
      _
    $region19: #{tpu_custom_call.1} parent=1 // pred_check_branch
      %53 = sbr.rel (0) target = $region21
    $region20: #{tpu_custom_call.1} parent=1 // pred_region
      %55 = dma.done [#allocation6], 5888
    $region21: #{tpu_custom_call.1} parent=1 // pred_fallthru
      _
    // Predicated region
    $region22: #{tpu_custom_call.1} parent=1 // pred_check
      _
    $region23: #{tpu_custom_call.1} parent=1 // pred_check_branch
      %57 = sbr.rel (0) target = $region25
    $region24: #{tpu_custom_call.1} parent=1 // pred_region
      %59 = dma.done [#allocation6], 32
    $region25: #{tpu_custom_call.1} parent=1 // pred_fallthru
      _
    %v61 = vld [vmem:[#allocation2] sm:$0xff]
    %v62 = vld [vmem:[#allocation2 + $0x8] sm:$0xff]
    %v63 = vld [vmem:[#allocation2 + $0x10] sm:$0xff]
    %v64 = vld [vmem:[#allocation2 + $0x18] sm:$0xff]
    %v65 = vld [vmem:[#allocation2 + $0x20] sm:$0xff]
    %v66 = vld [vmem:[#allocation2 + $0x28] sm:$0xff]
    %v67 = vld [vmem:[#allocation2 + $0x30] sm:$0xff]
    %v68 = vld [vmem:[#allocation2 + $0x38] sm:$0xff]
    %v69 = vld [vmem:[#allocation2 + $0x40] sm:$0xff]
    %v70 = vld [vmem:[#allocation2 + $0x48] sm:$0xff]
    %v71 = vld [vmem:[#allocation2 + $0x50] sm:$0xff]
    %v72 = vld [vmem:[#allocation2 + $0x58] sm:$0xff]
    %v73 = vld [vmem:[#allocation2 + $0x60] sm:$0xff]
    %v74 = vld [vmem:[#allocation2 + $0x68] sm:$0xff]
    %v75 = vld [vmem:[#allocation2 + $0x70] sm:$0xff]
    %v76 = vld [vmem:[#allocation2 + $0x78] sm:$0xff]
    %v77 = vld [vmem:[#allocation2 + $0x80] sm:$0xff]
    %v78 = vld [vmem:[#allocation2 + $0x88] sm:$0xff]
    %v79 = vld [vmem:[#allocation2 + $0x90] sm:$0x11]
    %v80 = vld [vmem:[#allocation2 + $0x98] sm:$0x11]
    %v81 = vld [vmem:[#allocation2 + $0xa0] sm:$0x11]
    %v82 = vld [vmem:[#allocation5] sm:$0xf]
    %v83 = vld [vmem:[#allocation5 + $0x4] sm:$0xf]
    %v84 = vld [vmem:[#allocation5 + $0x8] sm:$0xf]
    %v85 = vld [vmem:[#allocation5 + $0xc] sm:$0xf]
    %v86 = vld [vmem:[#allocation5 + $0x10] sm:$0xf]
    %v87 = vld [vmem:[#allocation5 + $0x14] sm:$0xf]
    %v88 = vld [vmem:[#allocation5 + $0x18] sm:$0xf]
    %v89 = vld [vmem:[#allocation5 + $0x1c] sm:$0xf]
    %v90 = vld [vmem:[#allocation5 + $0x20] sm:$0xf]
    %v91 = vld [vmem:[#allocation5 + $0x24] sm:$0xf]
    %v92 = vld [vmem:[#allocation5 + $0x28] sm:$0xf]
    %v93 = vld [vmem:[#allocation5 + $0x2c] sm:$0xf]
    %v94 = vld [vmem:[#allocation5 + $0x30] sm:$0xf]
    %v95 = vld [vmem:[#allocation5 + $0x34] sm:$0xf]
    %v96 = vld [vmem:[#allocation5 + $0x38] sm:$0xf]
    %v97 = vld [vmem:[#allocation5 + $0x3c] sm:$0xf]
    %v98 = vld [vmem:[#allocation5 + $0x40] sm:$0xf]
    %v99 = vld [vmem:[#allocation5 + $0x44] sm:$0xf]
    %v100 = vld [vmem:[#allocation5 + $0x48] sm:$0xf]
    %v101 = vld [vmem:[#allocation5 + $0x4c] sm:$0xf]
    %v102 = vld [vmem:[#allocation5 + $0x50] sm:$0xf]
    %v103 = vld [vmem:[#allocation5 + $0x54] sm:$0xf]
    %v104 = vld [vmem:[#allocation5 + $0x58] sm:$0xf]
    %v105 = vld [vmem:[#allocation5 + $0x5c] sm:$0xf]
    %v106 = vld [vmem:[#allocation5 + $0x60] sm:$0xf]
    %v107 = vld [vmem:[#allocation5 + $0x64] sm:$0xf]
    %v108 = vld [vmem:[#allocation5 + $0x68] sm:$0xf]
    %v109 = vld [vmem:[#allocation5 + $0x6c] sm:$0xf]
    %v110 = vld [vmem:[#allocation5 + $0x70] sm:$0xf]
    %v111 = vld [vmem:[#allocation5 + $0x74] sm:$0xf]
    %v112 = vld [vmem:[#allocation5 + $0x78] sm:$0xf]
    %v113 = vld [vmem:[#allocation5 + $0x7c] sm:$0xf]
    %v114 = vld [vmem:[#allocation5 + $0x80] sm:$0xf]
    %v115 = vld [vmem:[#allocation5 + $0x84] sm:$0xf]
    %v116 = vld [vmem:[#allocation5 + $0x88] sm:$0xf]
    %v117 = vld [vmem:[#allocation5 + $0x8c] sm:$0xf]
    %v118 = vld [vmem:[#allocation5 + $0x90] sm:$0xf]
    %v119 = vld [vmem:[#allocation5 + $0x94] sm:$0xf]
    %v120 = vld [vmem:[#allocation5 + $0x98] sm:$0xf]
    %v121 = vld [vmem:[#allocation5 + $0x9c] sm:$0xf]
    %v122 = vld [vmem:[#allocation5 + $0xa0] sm:$0xf]
    %v123 = vld [vmem:[#allocation5 + $0xa4] sm:$0xf]
    %v124 = vld [vmem:[#allocation5 + $0xa8] sm:$0xf]
    %v125 = vld [vmem:[#allocation5 + $0xac] sm:$0xf]
    %v126 = vld [vmem:[#allocation5 + $0xb0] sm:$0xf]
    %v127 = vld [vmem:[#allocation5 + $0xb4] sm:$0xf]
    %v128 = vld [vmem:[#allocation5 + $0xb8] sm:$0xf]
    %v129 = vld [vmem:[#allocation5 + $0xbc] sm:$0xf]
    %v130 = vld [vmem:[#allocation5 + $0xc0] sm:$0xf]
    %v131 = vld [vmem:[#allocation5 + $0xc4] sm:$0xf]
    %v132 = vld [vmem:[#allocation5 + $0xc8] sm:$0xf]
    %v133 = vld [vmem:[#allocation5 + $0xcc] sm:$0xf]
    %v134 = vld [vmem:[#allocation5 + $0xd0] sm:$0xf]
    %v135 = vld [vmem:[#allocation5 + $0xd4] sm:$0xf]
    %v136 = vld [vmem:[#allocation5 + $0xd8] sm:$0xf]
    %v137 = vld [vmem:[#allocation5 + $0xdc] sm:$0xf]
    %v138 = vld [vmem:[#allocation5 + $0xe0] sm:$0xf]
    %v139 = vld [vmem:[#allocation5 + $0xe4] sm:$0xf]
    %v140 = vld [vmem:[#allocation5 + $0xe8] sm:$0xf]
    %v141 = vld [vmem:[#allocation5 + $0xec] sm:$0xf]
    %v142 = vld [vmem:[#allocation5 + $0xf0] sm:$0xf]
    %v143 = vld [vmem:[#allocation5 + $0xf4] sm:$0xf]
    %v144 = vld [vmem:[#allocation5 + $0xf8] sm:$0xf]
    %v145 = vld [vmem:[#allocation5 + $0xfc] sm:$0xf]
    %v146 = vld [vmem:[#allocation5 + $0x100] sm:$0xf]
    %v147 = vld [vmem:[#allocation5 + $0x104] sm:$0xf]
    %v148 = vld [vmem:[#allocation5 + $0x108] sm:$0xf]
    %v149 = vld [vmem:[#allocation5 + $0x10c] sm:$0xf]
    %v150 = vld [vmem:[#allocation5 + $0x110] sm:$0xf]
    %v151 = vld [vmem:[#allocation5 + $0x114] sm:$0xf]
    %v152 = vld [vmem:[#allocation5 + $0x118] sm:$0xf]
    %v153 = vld [vmem:[#allocation5 + $0x11c] sm:$0xf]
    %v154 = vld [vmem:[#allocation5 + $0x120] sm:$0xf]
    %v155 = vld [vmem:[#allocation5 + $0x124] sm:$0xf]
    %v156 = vld [vmem:[#allocation5 + $0x128] sm:$0xf]
    %v157 = vld [vmem:[#allocation5 + $0x12c] sm:$0xf]
    %v158 = vld [vmem:[#allocation5 + $0x130] sm:$0xf]
    %v159 = vld [vmem:[#allocation5 + $0x134] sm:$0xf]
    %v160 = vld [vmem:[#allocation5 + $0x138] sm:$0xf]
    %v161 = vld [vmem:[#allocation5 + $0x13c] sm:$0xf]
    %v162 = vld [vmem:[#allocation5 + $0x140] sm:$0xf]
    %v163 = vld [vmem:[#allocation5 + $0x144] sm:$0xf]
    %v164 = vld [vmem:[#allocation5 + $0x148] sm:$0xf]
    %v165 = vld [vmem:[#allocation5 + $0x14c] sm:$0xf]
    %v166 = vld [vmem:[#allocation5 + $0x150] sm:$0xf]
    %v167 = vld [vmem:[#allocation5 + $0x154] sm:$0xf]
    %v168 = vld [vmem:[#allocation5 + $0x158] sm:$0xf]
    %v169 = vld [vmem:[#allocation5 + $0x15c] sm:$0xf]
    %v170 = vld [vmem:[#allocation5 + $0x160] sm:$0xf]
    %v171 = vld [vmem:[#allocation5 + $0x164] sm:$0xf]
    %v172 = vld [vmem:[#allocation5 + $0x168] sm:$0xf]
    %v173 = vld [vmem:[#allocation5 + $0x16c] sm:$0xf]
    %v195 = vunpack.c.l.b16 %v61
    %v196 = vunpack.c.h.b16 %v61
    %v197 = vunpack.c.l.b16 %v62
    %v198 = vunpack.c.h.b16 %v62
    %v199 = vunpack.c.l.b16 %v63
    %v200 = vunpack.c.h.b16 %v63
    %v201 = vunpack.c.l.b16 %v64
    %v202 = vunpack.c.h.b16 %v64
    %v203 = vunpack.c.l.b16 %v65
    %v204 = vunpack.c.h.b16 %v65
    %v205 = vunpack.c.l.b16 %v66
    %v206 = vunpack.c.h.b16 %v66
    %v207 = vunpack.c.l.b16 %v67
    %v208 = vunpack.c.h.b16 %v67
    %v209 = vunpack.c.l.b16 %v68
    %v210 = vunpack.c.h.b16 %v68
    %v211 = vunpack.c.l.b16 %v69
    %v212 = vunpack.c.h.b16 %v69
    %v213 = vunpack.c.l.b16 %v70
    %v214 = vunpack.c.h.b16 %v70
    %v215 = vunpack.c.l.b16 %v71
    %v216 = vunpack.c.h.b16 %v71
    %v217 = vunpack.c.l.b16 %v72
    %v218 = vunpack.c.h.b16 %v72
    %v219 = vunpack.c.l.b16 %v73
    %v220 = vunpack.c.h.b16 %v73
    %v221 = vunpack.c.l.b16 %v74
    %v222 = vunpack.c.h.b16 %v74
    %v223 = vunpack.c.l.b16 %v75
    %v224 = vunpack.c.h.b16 %v75
    %v225 = vunpack.c.l.b16 %v76
    %v226 = vunpack.c.h.b16 %v76
    %v227 = vunpack.c.l.b16 %v77
    %v228 = vunpack.c.h.b16 %v77
    %v229 = vunpack.c.l.b16 %v78
    %v230 = vunpack.c.h.b16 %v78
    %v231 = vunpack.c.l.b16 %v79
    %v232 = vunpack.c.h.b16 %v79
    %v233 = vunpack.c.l.b16 %v80
    %v234 = vunpack.c.h.b16 %v80
    %v235 = vunpack.c.l.b16 %v81
    %v236 = vunpack.c.h.b16 %v81
    %v237 = vpack.c.b16 %v201, %v195
    %v238 = vpack.c.b16 %v202, %v196
    %v239 = vpack.c.b16 %v203, %v197
    %v240 = vpack.c.b16 %v204, %v198
    %v241 = vpack.c.b16 %v205, %v199
    %v242 = vpack.c.b16 %v206, %v200
    %v243 = vpack.c.b16 %v213, %v207
    %v244 = vpack.c.b16 %v214, %v208
    %v245 = vpack.c.b16 %v215, %v209
    %v246 = vpack.c.b16 %v216, %v210
    %v247 = vpack.c.b16 %v217, %v211
    %v248 = vpack.c.b16 %v218, %v212
    %v249 = vpack.c.b16 %v225, %v219
    %v250 = vpack.c.b16 %v226, %v220
    %v251 = vpack.c.b16 %v227, %v221
    %v252 = vpack.c.b16 %v228, %v222
    %v253 = vpack.c.b16 %v229, %v223
    %v254 = vpack.c.b16 %v230, %v224
    %v255 = vpack.c.b16 %v231, %v231
    %v256 = vpack.c.b16 %v232, %v232
    %v257 = vpack.c.b16 %v233, %v233
    %v258 = vpack.c.b16 %v234, %v234
    %v259 = vpack.c.b16 %v235, %v235
    %v260 = vpack.c.b16 %v236, %v236
    %v373 = vunpack.c.l.b16 %v82
    %v374 = vunpack.c.l.b16 %v83
    %v375 = vunpack.c.l.b16 %v84
    %v376 = vunpack.c.l.b16 %v85
    %v377 = vunpack.c.l.b16 %v86
    %v378 = vunpack.c.l.b16 %v87
    %v379 = vunpack.c.l.b16 %v88
    %v380 = vunpack.c.l.b16 %v89
    %v381 = vunpack.c.l.b16 %v90
    %v382 = vunpack.c.l.b16 %v91
    %v383 = vunpack.c.l.b16 %v92
    %v384 = vunpack.c.l.b16 %v93
    %v385 = vunpack.c.l.b16 %v94
    %v386 = vunpack.c.l.b16 %v95
    %v387 = vunpack.c.l.b16 %v96
    %v388 = vunpack.c.l.b16 %v97
    %v389 = vunpack.c.l.b16 %v98
    %v390 = vunpack.c.l.b16 %v99
    %v391 = vunpack.c.l.b16 %v100
    %v392 = vunpack.c.l.b16 %v101
    %v393 = vunpack.c.l.b16 %v102
    %v394 = vunpack.c.l.b16 %v103
    %v395 = vunpack.c.l.b16 %v104
    %v396 = vunpack.c.l.b16 %v105
    %v397 = vunpack.c.l.b16 %v106
    %v398 = vunpack.c.l.b16 %v107
    %v399 = vunpack.c.l.b16 %v108
    %v400 = vunpack.c.l.b16 %v109
    %v401 = vunpack.c.l.b16 %v110
    %v402 = vunpack.c.l.b16 %v111
    %v403 = vunpack.c.l.b16 %v112
    %v404 = vunpack.c.l.b16 %v113
    %v405 = vunpack.c.l.b16 %v114
    %v406 = vunpack.c.l.b16 %v115
    %v407 = vunpack.c.l.b16 %v116
    %v408 = vunpack.c.l.b16 %v117
    %v409 = vunpack.c.l.b16 %v118
    %v410 = vunpack.c.l.b16 %v119
    %v411 = vunpack.c.l.b16 %v120
    %v412 = vunpack.c.l.b16 %v121
    %v413 = vunpack.c.l.b16 %v122
    %v414 = vunpack.c.l.b16 %v123
    %v415 = vunpack.c.l.b16 %v124
    %v416 = vunpack.c.l.b16 %v125
    %v417 = vunpack.c.l.b16 %v126
    %v418 = vunpack.c.l.b16 %v127
    %v419 = vunpack.c.l.b16 %v128
    %v420 = vunpack.c.l.b16 %v129
    %v421 = vunpack.c.l.b16 %v130
    %v422 = vunpack.c.l.b16 %v131
    %v423 = vunpack.c.l.b16 %v132
    %v424 = vunpack.c.l.b16 %v133
    %v425 = vunpack.c.l.b16 %v134
    %v426 = vunpack.c.l.b16 %v135
    %v427 = vunpack.c.l.b16 %v136
    %v428 = vunpack.c.l.b16 %v137
    %v429 = vunpack.c.l.b16 %v138
    %v430 = vunpack.c.l.b16 %v139
    %v431 = vunpack.c.l.b16 %v140
    %v432 = vunpack.c.l.b16 %v141
    %v433 = vunpack.c.l.b16 %v142
    %v434 = vunpack.c.l.b16 %v143
    %v435 = vunpack.c.l.b16 %v144
    %v436 = vunpack.c.l.b16 %v145
    %v437 = vunpack.c.l.b16 %v146
    %v438 = vunpack.c.l.b16 %v147
    %v439 = vunpack.c.l.b16 %v148
    %v440 = vunpack.c.l.b16 %v149
    %v441 = vunpack.c.l.b16 %v150
    %v442 = vunpack.c.l.b16 %v151
    %v443 = vunpack.c.l.b16 %v152
    %v444 = vunpack.c.l.b16 %v153
    %v445 = vunpack.c.l.b16 %v154
    %v446 = vunpack.c.l.b16 %v155
    %v447 = vunpack.c.l.b16 %v156
    %v448 = vunpack.c.l.b16 %v157
    %v449 = vunpack.c.l.b16 %v158
    %v450 = vunpack.c.l.b16 %v159
    %v451 = vunpack.c.l.b16 %v160
    %v452 = vunpack.c.l.b16 %v161
    %v453 = vunpack.c.l.b16 %v162
    %v454 = vunpack.c.l.b16 %v163
    %v455 = vunpack.c.l.b16 %v164
    %v456 = vunpack.c.l.b16 %v165
    %v457 = vunpack.c.l.b16 %v166
    %v458 = vunpack.c.l.b16 %v167
    %v459 = vunpack.c.l.b16 %v168
    %v460 = vunpack.c.l.b16 %v169
    %v461 = vunpack.c.l.b16 %v170
    %v462 = vunpack.c.l.b16 %v171
    %v463 = vunpack.c.l.b16 %v172
    %v464 = vunpack.c.l.b16 %v173
    %v465 = vpack.c.b16 %v374, %v373
    %v466 = vpack.c.b16 %v376, %v375
    %v467 = vpack.c.b16 %v378, %v377
    %v468 = vpack.c.b16 %v380, %v379
    %v469 = vpack.c.b16 %v382, %v381
    %v470 = vpack.c.b16 %v384, %v383
    %v471 = vpack.c.b16 %v386, %v385
    %v472 = vpack.c.b16 %v388, %v387
    %v473 = vpack.c.b16 %v390, %v389
    %v474 = vpack.c.b16 %v392, %v391
    %v475 = vpack.c.b16 %v394, %v393
    %v476 = vpack.c.b16 %v396, %v395
    %v477 = vpack.c.b16 %v398, %v397
    %v478 = vpack.c.b16 %v400, %v399
    %v479 = vpack.c.b16 %v402, %v401
    %v480 = vpack.c.b16 %v404, %v403
    %v481 = vpack.c.b16 %v406, %v405
    %v482 = vpack.c.b16 %v408, %v407
    %v483 = vpack.c.b16 %v410, %v409
    %v484 = vpack.c.b16 %v412, %v411
    %v485 = vpack.c.b16 %v414, %v413
    %v486 = vpack.c.b16 %v416, %v415
    %v487 = vpack.c.b16 %v418, %v417
    %v488 = vpack.c.b16 %v420, %v419
    %v489 = vpack.c.b16 %v422, %v421
    %v490 = vpack.c.b16 %v424, %v423
    %v491 = vpack.c.b16 %v426, %v425
    %v492 = vpack.c.b16 %v428, %v427
    %v493 = vpack.c.b16 %v430, %v429
    %v494 = vpack.c.b16 %v432, %v431
    %v495 = vpack.c.b16 %v434, %v433
    %v496 = vpack.c.b16 %v436, %v435
    %v497 = vpack.c.b16 %v438, %v437
    %v498 = vpack.c.b16 %v440, %v439
    %v499 = vpack.c.b16 %v442, %v441
    %v500 = vpack.c.b16 %v444, %v443
    %v501 = vpack.c.b16 %v446, %v445
    %v502 = vpack.c.b16 %v448, %v447
    %v503 = vpack.c.b16 %v450, %v449
    %v504 = vpack.c.b16 %v452, %v451
    %v505 = vpack.c.b16 %v454, %v453
    %v506 = vpack.c.b16 %v456, %v455
    %v507 = vpack.c.b16 %v458, %v457
    %v508 = vpack.c.b16 %v460, %v459
    %v509 = vpack.c.b16 %v462, %v461
    %v510 = vpack.c.b16 %v464, %v463
    %vm557 = vcmask 785408
    %v559 = vsel %vm557, %v242, 0
    %v562 = vsel %vm557, %v248, 0
    %v565 = vsel %vm557, %v254, 0
    %v568 = vsel %vm557, %v260, 0
    %570 = vmatpush.bf16.msra.mxu0 %v472
    %571 = vmatpush.bf16.msra.mxu0 %v471
    %572 = vmatpush.bf16.msra.mxu0 %v470
    %573 = vmatpush.bf16.msra.mxu0 %v469
    %574 = vmatpush.bf16.msra.mxu0 %v468
    %575 = vmatpush.bf16.msra.mxu0 %v467
    %576 = vmatpush.bf16.msra.mxu0 %v466
    %577 = vmatpush.bf16.msra.mxu0 %v465
    %578 = vmatmul.bf16.gmra.mxu0 %v237
    %v579 = vpop.f32.mrf.mxu0
    %v580 = vadd.f32 0.0, %v579
    %v581 = vpop.f32.mrf.mxu0
    %v582 = vadd.f32 0.0, %v581
    %583 = vmatmul.bf16.gmra.mxu0 %v243
    %v584 = vpop.f32.mrf.mxu0
    %v585 = vadd.f32 0.0, %v584
    %v586 = vpop.f32.mrf.mxu0
    %v587 = vadd.f32 0.0, %v586
    %588 = vmatmul.bf16.gmra.mxu0 %v249
    %v589 = vpop.f32.mrf.mxu0
    %v590 = vadd.f32 0.0, %v589
    %v591 = vpop.f32.mrf.mxu0
    %v592 = vadd.f32 0.0, %v591
    %593 = vmatmul.bf16.gmra.mxu0 %v255
    %v594 = vpop.f32.mrf.mxu0
    %v595 = vadd.f32 0.0, %v594
    %v596 = vpop.f32.mrf.mxu0
    %597 = vdwg.mxu0
    %598 = vmatpush.bf16.msra.mxu0 %v480
    %599 = vmatpush.bf16.msra.mxu0 %v479
    %600 = vmatpush.bf16.msra.mxu0 %v478
    %601 = vmatpush.bf16.msra.mxu0 %v477
    %602 = vmatpush.bf16.msra.mxu0 %v476
    %603 = vmatpush.bf16.msra.mxu0 %v475
    %604 = vmatpush.bf16.msra.mxu0 %v474
    %605 = vmatpush.bf16.msra.mxu0 %v473
    %606 = vmatmul.bf16.gmra.mxu0 %v238
    %v607 = vpop.f32.mrf.mxu0
    %v608 = vadd.f32 %v580, %v607
    %v609 = vpop.f32.mrf.mxu0
    %v610 = vadd.f32 %v582, %v609
    %611 = vmatmul.bf16.gmra.mxu0 %v244
    %v612 = vpop.f32.mrf.mxu0
    %v613 = vadd.f32 %v585, %v612
    %v614 = vpop.f32.mrf.mxu0
    %v615 = vadd.f32 %v587, %v614
    %616 = vmatmul.bf16.gmra.mxu0 %v250
    %v617 = vpop.f32.mrf.mxu0
    %v618 = vadd.f32 %v590, %v617
    %v619 = vpop.f32.mrf.mxu0
    %v620 = vadd.f32 %v592, %v619
    %621 = vmatmul.bf16.gmra.mxu0 %v256
    %v622 = vpop.f32.mrf.mxu0
    %v623 = vadd.f32 %v595, %v622
    %v624 = vpop.f32.mrf.mxu0
    %625 = vdwg.mxu0
    %626 = vmatpush.bf16.msra.mxu0 %v488
    %627 = vmatpush.bf16.msra.mxu0 %v487
    %628 = vmatpush.bf16.msra.mxu0 %v486
    %629 = vmatpush.bf16.msra.mxu0 %v485
    %630 = vmatpush.bf16.msra.mxu0 %v484
    %631 = vmatpush.bf16.msra.mxu0 %v483
    %632 = vmatpush.bf16.msra.mxu0 %v482
    %633 = vmatpush.bf16.msra.mxu0 %v481
    %634 = vmatmul.bf16.gmra.mxu0 %v239
    %v635 = vpop.f32.mrf.mxu0
    %v636 = vadd.f32 %v608, %v635
    %v637 = vpop.f32.mrf.mxu0
    %v638 = vadd.f32 %v610, %v637
    %639 = vmatmul.bf16.gmra.mxu0 %v245
    %v640 = vpop.f32.mrf.mxu0
    %v641 = vadd.f32 %v613, %v640
    %v642 = vpop.f32.mrf.mxu0
    %v643 = vadd.f32 %v615, %v642
    %644 = vmatmul.bf16.gmra.mxu0 %v251
    %v645 = vpop.f32.mrf.mxu0
    %v646 = vadd.f32 %v618, %v645
    %v647 = vpop.f32.mrf.mxu0
    %v648 = vadd.f32 %v620, %v647
    %649 = vmatmul.bf16.gmra.mxu0 %v257
    %v650 = vpop.f32.mrf.mxu0
    %v651 = vadd.f32 %v623, %v650
    %v652 = vpop.f32.mrf.mxu0
    %653 = vdwg.mxu0
    %654 = vmatpush.bf16.msra.mxu0 %v496
    %655 = vmatpush.bf16.msra.mxu0 %v495
    %656 = vmatpush.bf16.msra.mxu0 %v494
    %657 = vmatpush.bf16.msra.mxu0 %v493
    %658 = vmatpush.bf16.msra.mxu0 %v492
    %659 = vmatpush.bf16.msra.mxu0 %v491
    %660 = vmatpush.bf16.msra.mxu0 %v490
    %661 = vmatpush.bf16.msra.mxu0 %v489
    %662 = vmatmul.bf16.gmra.mxu0 %v240
    %v663 = vpop.f32.mrf.mxu0
    %v664 = vadd.f32 %v636, %v663
    %v665 = vpop.f32.mrf.mxu0
    %v666 = vadd.f32 %v638, %v665
    %667 = vmatmul.bf16.gmra.mxu0 %v246
    %v668 = vpop.f32.mrf.mxu0
    %v669 = vadd.f32 %v641, %v668
    %v670 = vpop.f32.mrf.mxu0
    %v671 = vadd.f32 %v643, %v670
    %672 = vmatmul.bf16.gmra.mxu0 %v252
    %v673 = vpop.f32.mrf.mxu0
    %v674 = vadd.f32 %v646, %v673
    %v675 = vpop.f32.mrf.mxu0
    %v676 = vadd.f32 %v648, %v675
    %677 = vmatmul.bf16.gmra.mxu0 %v258
    %v678 = vpop.f32.mrf.mxu0
    %v679 = vadd.f32 %v651, %v678
    %v680 = vpop.f32.mrf.mxu0
    %681 = vdwg.mxu0
    %682 = vmatpush.bf16.msra.mxu0 %v504
    %683 = vmatpush.bf16.msra.mxu0 %v503
    %684 = vmatpush.bf16.msra.mxu0 %v502
    %685 = vmatpush.bf16.msra.mxu0 %v501
    %686 = vmatpush.bf16.msra.mxu0 %v500
    %687 = vmatpush.bf16.msra.mxu0 %v499
    %688 = vmatpush.bf16.msra.mxu0 %v498
    %689 = vmatpush.bf16.msra.mxu0 %v497
    %690 = vmatmul.bf16.gmra.mxu0 %v241
    %v691 = vpop.f32.mrf.mxu0
    %v692 = vadd.f32 %v664, %v691
    %v693 = vpop.f32.mrf.mxu0
    %v694 = vadd.f32 %v666, %v693
    %695 = vmatmul.bf16.gmra.mxu0 %v247
    %v696 = vpop.f32.mrf.mxu0
    %v697 = vadd.f32 %v669, %v696
    %v698 = vpop.f32.mrf.mxu0
    %v699 = vadd.f32 %v671, %v698
    %700 = vmatmul.bf16.gmra.mxu0 %v253
    %v701 = vpop.f32.mrf.mxu0
    %v702 = vadd.f32 %v674, %v701
    %v703 = vpop.f32.mrf.mxu0
    %v704 = vadd.f32 %v676, %v703
    %705 = vmatmul.bf16.gmra.mxu0 %v259
    %v706 = vpop.f32.mrf.mxu0
    %v707 = vadd.f32 %v679, %v706
    %v708 = vpop.f32.mrf.mxu0
    %709 = vdwg.mxu0
    %710 = vmatpush.bf16.msra.mxu0 0
    %711 = vmatpush.bf16.msra.mxu0 0
    %712 = vmatpush.bf16.msra.mxu0 %v510
    %713 = vmatpush.bf16.msra.mxu0 %v509
    %714 = vmatpush.bf16.msra.mxu0 %v508
    %715 = vmatpush.bf16.msra.mxu0 %v507
    %716 = vmatpush.bf16.msra.mxu0 %v506
    %717 = vmatpush.bf16.msra.mxu0 %v505
    %718 = vmatmul.bf16.gmra.mxu0 %v559
    %v719 = vpop.f32.mrf.mxu0
    %v720 = vadd.f32 %v692, %v719
    %v721 = vpop.f32.mrf.mxu0
    %v722 = vadd.f32 %v694, %v721
    %723 = vmatmul.bf16.gmra.mxu0 %v562
    %v724 = vpop.f32.mrf.mxu0
    %v725 = vadd.f32 %v697, %v724
    %v726 = vpop.f32.mrf.mxu0
    %v727 = vadd.f32 %v699, %v726
    %728 = vmatmul.bf16.gmra.mxu0 %v565
    %v729 = vpop.f32.mrf.mxu0
    %v730 = vadd.f32 %v702, %v729
    %v731 = vpop.f32.mrf.mxu0
    %v732 = vadd.f32 %v704, %v731
    %733 = vmatmul.bf16.gmra.mxu0 %v568
    %v734 = vpop.f32.mrf.mxu0
    %v735 = vadd.f32 %v707, %v734
    %v736 = vpop.f32.mrf.mxu0
    %737 = vdwg.mxu0
    %v738 = vadd.f32 %v720, %v722
    %v739 = vadd.f32 %v738, %v725
    %v740 = vadd.f32 %v739, %v727
    %v741 = vadd.f32 %v740, %v730
    %v742 = vadd.f32 %v741, %v732
    %vm743 = vcmask 1040384
    %v744 = vsel %vm743, %v735, 0.0
    %v745 = vadd.f32 %v742, %v744
    %v746 = vrot.slane %v745, 4
    %v747 = vadd.f32 %v745, %v746
    %v748 = vrot.slane %v747, 2
    %v749 = vadd.f32 %v747, %v748
    %v750 = vrot.slane %v749, 1
    %v751 = vadd.f32 %v749, %v750
    %v752 = vmul.f32 %v720, %v720
    %v753 = vmul.f32 %v722, %v722
    %v754 = vmul.f32 %v725, %v725
    %v755 = vmul.f32 %v727, %v727
    %v756 = vmul.f32 %v730, %v730
    %v757 = vmul.f32 %v732, %v732
    %v758 = vmul.f32 %v735, %v735
    %v759 = vadd.f32 %v752, %v753
    %v760 = vadd.f32 %v759, %v754
    %v761 = vadd.f32 %v760, %v755
    %v762 = vadd.f32 %v761, %v756
    %v763 = vadd.f32 %v762, %v757
    %v764 = vsel %vm743, %v758, 0.0
    %v765 = vadd.f32 %v763, %v764
    %v766 = vrot.slane %v765, 4
    %v767 = vadd.f32 %v765, %v766
    %v768 = vrot.slane %v767, 2
    %v769 = vadd.f32 %v767, %v768
    %v770 = vrot.slane %v769, 1
    %v771 = vadd.f32 %v769, %v770
    %v772 = vmul.f32 %v751, 0.020408163
    %v773 = vmul.f32 %v771, 0.020408163
    %v774 = vmul.f32 %v772, %v772
    %v775 = vsub.f32 %v773, %v774
    %v776 = vadd.f32 %v775, 1e-05
    %v777 = vrsqrt.pop %v776
    %v778 = vmul.f32 %v777, %v776
    %v779 = vmul.f32 %v778, %v777
    %v780 = vmul.f32 0.5, %v779
    %v781 = vsub.f32 1.5, %v780
    %v782 = vmul.f32 %v777, %v781
    %vm783 = vweird.f32 %v776
    %vm784 = vweird.f32 %v777
    %vm785 = vmor %vm783, %vm784
    %v786 = vsel %vm785, %v777, %v782
    %v787 = vld [vmem:[#allocation7] sm:$0x1]
    %v788 = vld [vmem:[#allocation7 + $0x1] sm:$0x1]
    %v789 = vmul.f32 %v787, %v786
    %v790 = vmul.f32 %v772, %v789
    %v791 = vsub.f32 %v788, %v790
    %v792 = vperm.slane %v789, 0
    %v793 = vmul.f32 %v720, %v792
    %v794 = vmul.f32 %v722, %v792
    %v795 = vmul.f32 %v725, %v792
    %v796 = vmul.f32 %v727, %v792
    %v797 = vmul.f32 %v730, %v792
    %v798 = vmul.f32 %v732, %v792
    %v799 = vmul.f32 %v735, %v792
    %v800 = vperm.slane %v791, 0
    %v801 = vadd.f32 %v793, %v800
    %v802 = vadd.f32 %v794, %v800
    %v803 = vadd.f32 %v795, %v800
    %v804 = vadd.f32 %v796, %v800
    %v805 = vadd.f32 %v797, %v800
    %v806 = vadd.f32 %v798, %v800
    %v807 = vadd.f32 %v799, %v800
    %808 = vst [vmem:[#allocation8] sm:$0xff] %v801
    %809 = vst [vmem:[#allocation8 + $0x8] sm:$0xff] %v802
    %810 = vst [vmem:[#allocation8 + $0x10] sm:$0xff] %v803
    %811 = vst [vmem:[#allocation8 + $0x18] sm:$0xff] %v804
    %812 = vst [vmem:[#allocation8 + $0x20] sm:$0xff] %v805
    %813 = vst [vmem:[#allocation8 + $0x28] sm:$0xff] %v806
    %814 = vst [vmem:[#allocation8 + $0x30] sm:$0x1] %v807
    // Predicated region
    $region26: #{tpu_custom_call.1} parent=1 // pred_check
      _
    $region27: #{tpu_custom_call.1} parent=1 // pred_check_branch
      %816 = sbr.rel (0) target = $region29
    $region28: #{tpu_custom_call.1} parent=1 // pred_region
      %818 = vsyncadd [#allocation4], 0
      %s819 = sshll.u32 [#allocation8], 4
      %s820 = int_to_ptr.vmem [resolvable:$true] %s819
      %s821 = sshll.u32 %s3, 4
      %s822 = int_to_ptr.hbm [resolvable:$true] %s821
      %827 = dma.vmem_to_hbm [thread:$0]  %s820, 896, %s822, [#allocation4], 128, 128, 8
    $region29: #{tpu_custom_call.1} parent=1 // pred_fallthru
      _
    // Predicated region
    $region30: #{tpu_custom_call.1} parent=1 // pred_check
      _
    $region31: #{tpu_custom_call.1} parent=1 // pred_check_branch
      %829 = sbr.rel (0) target = $region33
    $region32: #{tpu_custom_call.1} parent=1 // pred_region
      %831 = dma.done [#allocation4], 896
    $region33: #{tpu_custom_call.1} parent=1 // pred_fallthru
      _
    %832 = vsyncpa [#allocation3], 1
    %833 = vsyncpa [#allocation6], 1
    %834 = vsyncpa [#allocation4], 1

</llo_original>
